<compile_context>
chip_gen: v7x
topology: tpu7x:2x2x1
jax: 0.10.0
libtpu: 0.0.40
codegen_flags: <defaults>
</compile_context>

<pallas_src>
import numpy as np

import jax
import jax.numpy as jnp
from jax.experimental import pallas as pl
from jax.experimental.pallas import tpu as pltpu


def _round_up(x, m):
    return ((x + m - 1) // m) * m


# ---------------------------------------------------------------------------
# Per-generation tile presets.
# ---------------------------------------------------------------------------
def _device_presets():
    kind = ""
    try:
        kind = jax.devices()[0].device_kind.lower()
    except Exception:
        pass
    if "7" in kind:
        # v7x: 64 MiB VMEM per TC, 2 TensorCores per chip -> smaller tiles,
        # tighter vmem limit, make sure both TCs get parallel tiles.
        return dict(tm=512, tn=512, tk=512,
                    vmem_limit_bytes=48 * 1024 * 1024, num_cores=2)
    if "v6" in kind or "v5e" in kind or "v5 lite" in kind:
        # 128 MiB VMEM, 1 TC: big tiles halve operand re-reads, quarter the
        # grid-step count.
        return dict(tm=1024, tn=1024, tk=512,
                    vmem_limit_bytes=64 * 1024 * 1024, num_cores=1)
    if "v4" in kind or "v5p" in kind or "v5" in kind:
        # 128 MiB VMEM, megacore (2 TCs).
        return dict(tm=1024, tn=1024, tk=512,
                    vmem_limit_bytes=64 * 1024 * 1024, num_cores=2)
    # Unknown device: conservative (fits v7x scoped defaults).
    return dict(tm=512, tn=512, tk=512,
                vmem_limit_bytes=32 * 1024 * 1024, num_cores=1)


# ---------------------------------------------------------------------------
# Kernels.
# ---------------------------------------------------------------------------
def _make_kernel(scale_lhs, single_k):
    """U-tile @ Vh-tile matmul with the relu'd singular values folded in as a
    column scale of U (scale_lhs) or a row scale of Vh (otherwise).  The scale
    is a single vmul in the operand dtype; MXU accumulation is f32."""

    if single_k:
        # Whole (padded) rank fits one k tile: no accumulator, no init/finalize.
        def kernel(u_ref, s_ref, vh_ref, o_ref):
            if scale_lhs:
                lhs = u_ref[...] * s_ref[...]          # (tm, R) * (1, R)
                rhs = vh_ref[...]
            else:
                lhs = u_ref[...]
                rhs = vh_ref[...] * s_ref[...]         # (R, tn) * (R, 1)
            o_ref[...] = jnp.dot(
                lhs, rhs, preferred_element_type=jnp.float32
            ).astype(o_ref.dtype)

        return kernel

    def kernel(u_ref, s_ref, vh_ref, o_ref, acc_ref):
        k = pl.program_id(2)
        if scale_lhs:
            lhs = u_ref[...] * s_ref[...]              # (tm, tk) * (1, tk)
            rhs = vh_ref[...]
        else:
            lhs = u_ref[...]
            rhs = vh_ref[...] * s_ref[...]             # (tk, tn) * (tk, 1)
        prod = jnp.dot(lhs, rhs, preferred_element_type=jnp.float32)

        @pl.when(k == 0)
        def _():
            acc_ref[...] = prod                        # replaces zero-init pass

        @pl.when(k > 0)
        def _():
            acc_ref[...] += prod

        @pl.when(k == pl.num_programs(2) - 1)
        def _():
            o_ref[...] = acc_ref[...].astype(o_ref.dtype)

    return kernel


# ---------------------------------------------------------------------------
# Tiling plan (resolved once at module init).
# ---------------------------------------------------------------------------
def _build_plan(M, R, N, dtype, presets, tm=None, tn=None, tk=None,
                vmem_limit_bytes=None):
    tm = presets["tm"] if tm is None else tm
    tn = presets["tn"] if tn is None else tn
    tk = presets["tk"] if tk is None else tk
    vmem_limit_bytes = (presets["vmem_limit_bytes"]
                        if vmem_limit_bytes is None else vmem_limit_bytes)
    num_cores = presets["num_cores"]

    itemsize = jnp.dtype(dtype).itemsize
    row_mult = 16 if itemsize == 2 else 8   # bf16 packs 16 rows per vreg

    # Clamp tiles to the (rounded) problem; keep sublane/lane alignment.
    tm = _round_up(min(tm, _round_up(M, row_mult)), row_mult)
    tn = _round_up(min(tn, _round_up(N, 128)), 128)
    tk = _round_up(min(tk, _round_up(R, 128)), 128)

    # Megacore / v7x: if the parallel grid collapses to a single tile on a
    # big-enough problem, split one parallel axis so both TCs get work.
    if (num_cores >= 2
            and (_round_up(M, tm) // tm) * (_round_up(N, tn) // tn) < 2
            and M * N >= 256 * 256):
        n128 = _round_up(N, 128)
        m_al = _round_up(M, row_mult)
        if n128 >= 2 * 128:
            tn = _round_up((n128 + 1) // 2, 128)
        elif m_al >= 2 * row_mult:
            tm = _round_up((m_al + 1) // 2, row_mult)

    Mp, Np, Rp = _round_up(M, tm), _round_up(N, tn), _round_up(R, tk)
    return dict(
        tm=tm, tn=tn, tk=tk, Mp=Mp, Np=Np, Rp=Rp,
        grid=(Mp // tm, Np // tn, Rp // tk),
        single_k=(Rp == tk),
        # Scale the operand that gets re-scaled the fewest times per forward:
        # lhs is scaled grid_j times, rhs grid_i times -> compare tm vs tn.
        scale_lhs=(tn >= tm),
        vmem_limit_bytes=vmem_limit_bytes,
    )


def _build_recon_call(plan, out_dtype):
    tm, tn, tk = plan["tm"], plan["tn"], plan["tk"]
    Mp, Np, Rp = plan["Mp"], plan["Np"], plan["Rp"]
    gi, gj, gk = plan["grid"]
    scale_lhs, single_k = plan["scale_lhs"], plan["single_k"]

    kernel = _make_kernel(scale_lhs, single_k)

    if single_k:
        grid = (gi, gj)
        u_spec = pl.BlockSpec((tm, Rp), lambda i, j: (i, 0))
        vh_spec = pl.BlockSpec((Rp, tn), lambda i, j: (0, j))
        out_spec = pl.BlockSpec((tm, tn), lambda i, j: (i, j))
        s_spec = (pl.BlockSpec((1, Rp), lambda i, j: (0, 0)) if scale_lhs
                  else pl.BlockSpec((Rp, 1), lambda i, j: (0, 0)))
        scratch = []
        dims = ("parallel", "parallel")
    else:
        grid = (gi, gj, gk)
        u_spec = pl.BlockSpec((tm, tk), lambda i, j, k: (i, k))
        vh_spec = pl.BlockSpec((tk, tn), lambda i, j, k: (k, j))
        out_spec = pl.BlockSpec((tm, tn), lambda i, j, k: (i, j))
        s_spec = (pl.BlockSpec((1, tk), lambda i, j, k: (0, k)) if scale_lhs
                  else pl.BlockSpec((tk, 1), lambda i, j, k: (k, 0)))
        scratch = [pltpu.VMEM((tm, tn), jnp.float32)]
        dims = ("parallel", "parallel", "arbitrary")

    return pl.pallas_call(
        kernel,
        out_shape=jax.ShapeDtypeStruct((Mp, Np), out_dtype),
        grid_spec=pltpu.PrefetchScalarGridSpec(
            num_scalar_prefetch=0,
            grid=grid,
            in_specs=[u_spec, s_spec, vh_spec],
            out_specs=out_spec,
            scratch_shapes=scratch,
        ),
        compiler_params=pltpu.CompilerParams(
            dimension_semantics=dims,
            vmem_limit_bytes=plan["vmem_limit_bytes"],
        ),
    )


# ---------------------------------------------------------------------------
# Module wrapper (JAX/Pallas analogue of the PyTorch `model_SVD` module).
# ---------------------------------------------------------------------------
class ModelSVDPallas:
    def __init__(self, w, scale=1.0, tm=None, tn=None, tk=None,
                 vmem_limit_bytes=None):
        self.w_shape = tuple(w.shape)
        w2d = jnp.asarray(w).reshape(w.shape[0], -1)
        self._dtype = w2d.dtype

        # SVD once at init (host-side, f32) -- not the hot path.
        U_np, S_np, Vh_np = np.linalg.svd(
            np.asarray(w2d, dtype=np.float32), full_matrices=False)

        # Public buffers (unpadded, like the torch module).  Matmul operands
        # stay in the weight dtype (bf16 weights stay bf16 on the MXU).
        self.U = jnp.asarray(U_np).astype(self._dtype)
        self.Vh = jnp.asarray(Vh_np).astype(self._dtype)
        self.S = jnp.asarray(S_np, dtype=jnp.float32)
        self.delta = jnp.zeros_like(self.S)          # nn.Parameter init: zeros
        self.scale = jnp.float32(scale)

        M, R = self.U.shape
        _, N = self.Vh.shape
        self._M, self._R, self._N = M, R, N

        plan = _build_plan(M, R, N, self._dtype, _device_presets(),
                           tm, tn, tk, vmem_limit_bytes)
        self._plan = plan
        Mp, Np, Rp = plan["Mp"], plan["Np"], plan["Rp"]

        # Padding of the static operands is hoisted out of forward.
        self._Up = (jnp.pad(self.U, ((0, Mp - M), (0, Rp - R)))
                    if (Mp, Rp) != (M, R) else self.U)
        self._Vhp = (jnp.pad(self.Vh, ((0, Rp - R), (0, Np - N)))
                     if (Rp, Np) != (R, N) else self.Vh)
        self._needs_slice = (Mp != M) or (Np != N)
        self._recon = _build_recon_call(plan, self._dtype)

    def forward(self, w_unused=None):
        # TODO(synk): for fleets of tiny conv weights, batch several layers
        # into one grid (or cache the reconstruction until delta/scale change)
        # -- per-layer calls at toy sizes are launch-overhead bound.
        plan = self._plan
        Rp = plan["Rp"]

        # Tiny relu(S + scale*delta) stays out of the grid (one vreg of VPU
        # work in the wrapper); cast once to the operand dtype so the in-kernel
        # scale is a single vmul.
        s_eff = jnp.maximum(self.S + self.scale * self.delta, 0.0)
        if Rp != self._R:
            s_eff = jnp.pad(s_eff, (0, Rp - self._R))
        s_eff = s_eff.astype(self._dtype)
        s_arr = s_eff.reshape(1, Rp) if plan["scale_lhs"] else s_eff.reshape(Rp, 1)

        out = self._recon(self._Up, s_arr, self._Vhp)
        if self._needs_slice:
            out = out[: self._M, : self._N]
        return out.reshape(self.w_shape)

    __call__ = forward


# ---------------------------------------------------------------------------
# Self-test.
# ---------------------------------------------------------------------------
if __name__ == "__main__":
    key = jax.random.PRNGKey(0)
    k1, k2, k3, k4, kd1, kd2, kd3, kd4 = jax.random.split(key, 8)

    def ref_forward(mod):
        s_eff = jnp.maximum(mod.S + mod.scale * mod.delta, 0.0)
        return (mod.U.astype(jnp.float32) @ jnp.diag(s_eff)
                @ mod.Vh.astype(jnp.float32)).astype(mod._dtype).reshape(mod.w_shape)

    def check(o, mod):
        assert o.shape == mod.w_shape and o.dtype == mod._dtype
        assert jnp.allclose(o, ref_forward(mod), atol=2e-3, rtol=2e-3)

    # 1) Tiny conv weight (16,8,4,4) -> (16,128): single grid point, single-k
    #    fused path (no accumulator).  Nonzero delta, one relu-clamped value.
    w1 = jax.random.normal(k1, (16, 8, 4, 4), dtype=jnp.float32)
    m1 = ModelSVDPallas(w1, scale=0.5)
    d1 = 0.1 * jax.random.normal(kd1, m1.S.shape, dtype=jnp.float32)
    d1 = d1.at[0].set(-(m1.S[0] / m1.scale + 1.0))   # S[0] + scale*delta[0] < 0
    m1.delta = d1
    check(jax.block_until_ready(m1.forward(w1)), m1)

    # 2) (160,32,3,3) -> (160,288), small asymmetric tiles: (3,3,2) grid,
    #    lhs-scaled path, k-axis accumulation, M/N/K padding + output slice.
    w2 = jax.random.normal(k2, (160, 32, 3, 3), dtype=jnp.float32)
    m2 = ModelSVDPallas(w2, scale=1.0, tm=64, tn=128, tk=128)
    m2.delta = 0.1 * jax.random.normal(kd2, m2.S.shape, dtype=jnp.float32)
    check(jax.block_until_ready(m2.forward(w2)), m2)

    # 3) (192,8,3,3) -> (192,72), tm > tn: rhs-scaled (scale Vh rows),
    #    single-k path.
    w3 = jax.random.normal(k3, (192, 8, 3, 3), dtype=jnp.float32)
    m3 = ModelSVDPallas(w3, scale=1.0, tm=256, tn=128, tk=128)
    m3.delta = 0.1 * jax.random.normal(kd3, m3.S.shape, dtype=jnp.float32)
    check(jax.block_until_ready(m3.forward(w3)), m3)

    # 4) (512,16,4,4) -> (512,256), tm > tn with R > tk: rhs-scaled path with
    #    k-axis accumulation on a (2,2,2) grid.
    w4 = jax.random.normal(k4, (512, 16, 4, 4), dtype=jnp.float32)
    m4 = ModelSVDPallas(w4, scale=1.0, tm=256, tn=128, tk=128)
    m4.delta = 0.1 * jax.random.normal(kd4, m4.S.shape, dtype=jnp.float32)
    check(jax.block_until_ready(m4.forward(w4)), m4)

    print("KERNEL_OK")
</pallas_src>

<mosaic_0001>
module attributes {stable_mosaic.version = 11 : i64} {
  func.func @kernel(%arg0: i32, %arg1: i32, %arg2: memref<16x128xf32, #tpu.memory_space<vmem>>, %arg3: memref<1x128xf32, #tpu.memory_space<vmem>>, %arg4: memref<128x128xf32, #tpu.memory_space<vmem>>, %arg5: memref<16x128xf32, #tpu.memory_space<vmem>>) attributes {dimension_semantics = [#tpu.dimension_semantics<parallel>, #tpu.dimension_semantics<parallel>], iteration_bounds = array<i64: 1, 1>, scalar_prefetch = 0 : i64, scratch_operands = 0 : i64, tpu.core_type = #tpu.core_type<tc>, window_params = [{transform_indices = @transform_0, window_bounds = array<i64: 16, 128>}, {pipeline_mode = #tpu.pipeline_mode<synchronous>, transform_indices = @transform_1, window_bounds = array<i64: 1, 128>}, {transform_indices = @transform_2, window_bounds = array<i64: 128, 128>}, {transform_indices = @transform_3, window_bounds = array<i64: 16, 128>}]} {
    %c0 = arith.constant 0 : index
    %c0_0 = arith.constant 0 : index
    %0 = vector.load %arg2[%c0, %c0_0] : memref<16x128xf32, #tpu.memory_space<vmem>>, vector<16x128xf32>
    %c0_1 = arith.constant 0 : index
    %c0_2 = arith.constant 0 : index
    %1 = vector.load %arg3[%c0_1, %c0_2] : memref<1x128xf32, #tpu.memory_space<vmem>>, vector<1x128xf32>
    %2 = vector.broadcast %1 : vector<1x128xf32> to vector<16x128xf32>
    %3 = arith.mulf %0, %2 : vector<16x128xf32>
    %c0_3 = arith.constant 0 : index
    %c0_4 = arith.constant 0 : index
    %4 = vector.load %arg4[%c0_3, %c0_4] : memref<128x128xf32, #tpu.memory_space<vmem>>, vector<128x128xf32>
    %cst = arith.constant dense<0.000000e+00> : vector<16x128xf32>
    %5 = tpu.matmul %3, %4, %cst {dimension_numbers = #tpu.dot_dimension_numbers<[1], [0], [0], [1], [0, 0, 1, 1], [], []>} : vector<16x128xf32>, vector<128x128xf32>, vector<16x128xf32> -> vector<16x128xf32>
    %c0_5 = arith.constant 0 : index
    %c0_6 = arith.constant 0 : index
    %6 = vector.load %arg5[%c0_5, %c0_6] : memref<16x128xf32, #tpu.memory_space<vmem>>, vector<16x128xf32>
    tpu.vector_store %arg5[%c0_5, %c0_6], %5 {strides = array<i32>} : memref<16x128xf32, #tpu.memory_space<vmem>>, vector<16x128xf32>,
    return
  }
  func.func @transform_0(%arg0: i32, %arg1: i32) -> (i32, i32) {
    %c0_i32 = arith.constant 0 : i32
    %c0_i32_0 = arith.constant 0 : i32
    return %arg0, %c0_i32 : i32, i32
  }
  func.func @transform_1(%arg0: i32, %arg1: i32) -> (i32, i32) {
    %c0_i32 = arith.constant 0 : i32
    %c0_i32_0 = arith.constant 0 : i32
    %c0_i32_1 = arith.constant 0 : i32
    return %c0_i32, %c0_i32_0 : i32, i32
  }
  func.func @transform_2(%arg0: i32, %arg1: i32) -> (i32, i32) {
    %c0_i32 = arith.constant 0 : i32
    %c0_i32_0 = arith.constant 0 : i32
    return %c0_i32, %arg1 : i32, i32
  }
  func.func @transform_3(%arg0: i32, %arg1: i32) -> (i32, i32) {
    %c0_i32 = arith.constant 0 : i32
    return %arg0, %arg1 : i32, i32
  }
}

</mosaic_0001>

<llo_original>
// kernel: tpu_custom_call.1
$region0: #{tpu_custom_call.1}
  #allocation0 [shape = 'u32[]', space=smem, size = 0x4, offset = 0x4, fixed_abs, tag = 'smem constant byte address 0x4 - core index']
  #allocation1 [shape = 'u32[144,128]{1,0:T(1,128)}', space=vmem, size = 0x12000, scoped, tag = 'internal scratch']
  %s0 = inlined_call_operand.hbm [shape: f32[16,128], index: 0, kind: input, shape index: {}]
  %s1 = inlined_call_operand.vmem [shape: f32[1,128], index: 1, kind: input, shape index: {}]
  %s2 = inlined_call_operand.hbm [shape: f32[128,128], index: 2, kind: input, shape index: {}]
  %s3 = inlined_call_operand.hbm [shape: f32[16,128], index: 3, kind: output, shape index: {}]
  %s4 = sld [smem:[#allocation0]]
  $region30: #{tpu_custom_call.1} parent=0
    _
  %s6 = ssub.s32 1, %s4
  %s7 = scalar_select 0, %s6, %s4
  $region1: #{tpu_custom_call.1} parent=0
    #allocation2 [shape = 'u8[8192]{0}', space=vmem, size = 0x2000, scoped, tag = 'input window, operand 0, single buffered']
    #allocation3 [shape = 's32[1]{0}', space=sflag, size = 0x4, scoped, tag = 'scoped memory for tpu_custom_call.1']
    #allocation4 [shape = 's32[1]{0}', space=sflag, size = 0x4, scoped, tag = 'scoped memory for tpu_custom_call.1']
    #allocation5 [shape = 'u8[65536]{0}', space=vmem, size = 0x10000, scoped, tag = 'input window, operand 2, single buffered']
    #allocation6 [shape = 's32[1]{0}', space=sflag, size = 0x4, scoped, tag = 'scoped memory for tpu_custom_call.1']
    #allocation7 [shape = 'u8[8192]{0}', space=vmem, size = 0x2000, scoped, tag = 'output window, operand 0, single buffered']
    %8 = vsyncpa [#allocation3], 0
    %9 = vsyncpa [#allocation6], 0
    %10 = vsyncpa [#allocation4], 0
    // Predicated region
    $region2: #{tpu_custom_call.1} parent=1 // pred_check
      _
    $region3: #{tpu_custom_call.1} parent=1 // pred_check_branch
      %12 = sbr.rel (0) target = $region5
    $region4: #{tpu_custom_call.1} parent=1 // pred_region
      %s14 = ssub.s32 256, 256
      %15 = vsyncadd [#allocation3], %s14
      %s16 = sshll.u32 [#allocation2], 4
      %s17 = int_to_ptr.vmem [resolvable:$true] %s16
      %22 = dma.hbm_to_vmem [thread:$0]  %s0, 256, %s17, [#allocation3], 128, 128, 8
    $region5: #{tpu_custom_call.1} parent=1 // pred_fallthru
      _
    // Predicated region
    $region6: #{tpu_custom_call.1} parent=1 // pred_check
      _
    $region7: #{tpu_custom_call.1} parent=1 // pred_check_branch
      %24 = sbr.rel (0) target = $region9
    $region8: #{tpu_custom_call.1} parent=1 // pred_region
      _
    $region9: #{tpu_custom_call.1} parent=1 // pred_fallthru
      _
    // Predicated region
    $region10: #{tpu_custom_call.1} parent=1 // pred_check
      _
    $region11: #{tpu_custom_call.1} parent=1 // pred_check_branch
      %26 = sbr.rel (0) target = $region13
    $region12: #{tpu_custom_call.1} parent=1 // pred_region
      %s28 = ssub.s32 2048, 2048
      %29 = vsyncadd [#allocation6], %s28
      %s30 = sshll.u32 [#allocation5], 4
      %s31 = int_to_ptr.vmem [resolvable:$true] %s30
      %36 = dma.hbm_to_vmem [thread:$0]  %s2, 2048, %s31, [#allocation6], 128, 128, 8
    $region13: #{tpu_custom_call.1} parent=1 // pred_fallthru
      _
    // Predicated region
    $region14: #{tpu_custom_call.1} parent=1 // pred_check
      _
    $region15: #{tpu_custom_call.1} parent=1 // pred_check_branch
      %38 = sbr.rel (0) target = $region17
    $region16: #{tpu_custom_call.1} parent=1 // pred_region
      %39 = dma.done [#allocation3], 256
    $region17: #{tpu_custom_call.1} parent=1 // pred_fallthru
      _
    // Predicated region
    $region18: #{tpu_custom_call.1} parent=1 // pred_check
      _
    $region19: #{tpu_custom_call.1} parent=1 // pred_check_branch
      %41 = sbr.rel (0) target = $region21
    $region20: #{tpu_custom_call.1} parent=1 // pred_region
      %42 = dma.done [#allocation6], 2048
    $region21: #{tpu_custom_call.1} parent=1 // pred_fallthru
      _
    %v43 = vld [vmem:[#allocation2] sm:$0xff]
    %v44 = vld [vmem:[#allocation2 + $0x8] sm:$0xff]
    %v45 = vld [vmem:[%s1] sm:$0x1]
    %v47 = vlaneseq
    %v48 = vshrl.u32 %v47, 7
    %v49 = vsub.s32 0, %v48
    %v50 = vrot.slane %v45, %v49
    %v52 = vmul.f32 %v43, %v50
    %v53 = vmul.f32 %v44, %v50
    %v54 = vld [vmem:[#allocation5] sm:$0xff]
    %v55 = vld [vmem:[#allocation5 + $0x8] sm:$0xff]
    %v56 = vld [vmem:[#allocation5 + $0x10] sm:$0xff]
    %v57 = vld [vmem:[#allocation5 + $0x18] sm:$0xff]
    %v58 = vld [vmem:[#allocation5 + $0x20] sm:$0xff]
    %v59 = vld [vmem:[#allocation5 + $0x28] sm:$0xff]
    %v60 = vld [vmem:[#allocation5 + $0x30] sm:$0xff]
    %v61 = vld [vmem:[#allocation5 + $0x38] sm:$0xff]
    %v62 = vld [vmem:[#allocation5 + $0x40] sm:$0xff]
    %v63 = vld [vmem:[#allocation5 + $0x48] sm:$0xff]
    %v64 = vld [vmem:[#allocation5 + $0x50] sm:$0xff]
    %v65 = vld [vmem:[#allocation5 + $0x58] sm:$0xff]
    %v66 = vld [vmem:[#allocation5 + $0x60] sm:$0xff]
    %v67 = vld [vmem:[#allocation5 + $0x68] sm:$0xff]
    %v68 = vld [vmem:[#allocation5 + $0x70] sm:$0xff]
    %v69 = vld [vmem:[#allocation5 + $0x78] sm:$0xff]
    %70 = vmatprep.subr.mxu0 0.0
    %71 = vmatpush1.msra.mxu0 %v54
    %72 = vmatprep.subr.mxu0 0.0
    %73 = vmatpush1.msra.mxu0 %v55
    %74 = vmatprep.subr.mxu0 0.0
    %75 = vmatpush1.msra.mxu0 %v56
    %76 = vmatprep.subr.mxu0 0.0
    %77 = vmatpush1.msra.mxu0 %v57
    %78 = vmatprep.subr.mxu0 0.0
    %79 = vmatpush1.msra.mxu0 %v58
    %80 = vmatprep.subr.mxu0 0.0
    %81 = vmatpush1.msra.mxu0 %v59
    %82 = vmatprep.subr.mxu0 0.0
    %83 = vmatpush1.msra.mxu0 %v60
    %84 = vmatprep.subr.mxu0 0.0
    %85 = vmatpush1.msra.mxu0 %v61
    %86 = vmatprep.subr.mxu0 0.0
    %87 = vmatpush1.msra.mxu0 %v62
    %88 = vmatprep.subr.mxu0 0.0
    %89 = vmatpush1.msra.mxu0 %v63
    %90 = vmatprep.subr.mxu0 0.0
    %91 = vmatpush1.msra.mxu0 %v64
    %92 = vmatprep.subr.mxu0 0.0
    %93 = vmatpush1.msra.mxu0 %v65
    %94 = vmatprep.subr.mxu0 0.0
    %95 = vmatpush1.msra.mxu0 %v66
    %96 = vmatprep.subr.mxu0 0.0
    %97 = vmatpush1.msra.mxu0 %v67
    %98 = vmatprep.subr.mxu0 0.0
    %99 = vmatpush1.msra.mxu0 %v68
    %100 = vmatprep.subr.mxu0 0.0
    %101 = vmatpush1.msra.mxu0 %v69
    %102 = vmatprep.subr.mxu0 0.0
    %103 = vmatpush1.msra.mxu0 0.0
    %104 = vmatprep.subr.mxu0 0.0
    %105 = vmatpush1.msra.mxu0 0.0
    %106 = vmatprep.subr.mxu0 0.0
    %107 = vmatpush1.msra.mxu0 0.0
    %108 = vmatprep.subr.mxu0 0.0
    %109 = vmatpush1.msra.mxu0 0.0
    %110 = vmatprep.subr.mxu0 0.0
    %111 = vmatpush1.msra.mxu0 0.0
    %112 = vmatprep.subr.mxu0 0.0
    %113 = vmatpush1.msra.mxu0 0.0
    %114 = vmatprep.subr.mxu0 0.0
    %115 = vmatpush1.msra.mxu0 0.0
    %116 = vmatprep.subr.mxu0 0.0
    %117 = vmatpush1.msra.mxu0 0.0
    %118 = vmatprep.subr.mxu0 0.0
    %119 = vmatpush1.msra.mxu0 0.0
    %120 = vmatprep.subr.mxu0 0.0
    %121 = vmatpush1.msra.mxu0 0.0
    %122 = vmatprep.subr.mxu0 0.0
    %123 = vmatpush1.msra.mxu0 0.0
    %124 = vmatprep.subr.mxu0 0.0
    %125 = vmatpush1.msra.mxu0 0.0
    %126 = vmatprep.subr.mxu0 0.0
    %127 = vmatpush1.msra.mxu0 0.0
    %128 = vmatprep.subr.mxu0 0.0
    %129 = vmatpush1.msra.mxu0 0.0
    %130 = vmatprep.subr.mxu0 0.0
    %131 = vmatpush1.msra.mxu0 0.0
    %132 = vmatprep.subr.mxu0 0.0
    %133 = vmatpush1.msra.mxu0 0.0
    %134 = vmatprep.mubr.f32.mxu0 0.0
    %135 = vmatmul.mubr.f32.gmra.mrb[0].mxu0 %v52
    %v136 = vpop.f32.mrb[0].mxu0
    %v137 = vadd.f32 0.0, %v136
    %v138 = vpop.f32.mrb[0].mxu0
    %139 = vmatprep.mubr.f32.mxu0 0.0
    %140 = vmatmul.mubr.f32.gmra.mrb[0].mxu0 %v53
    %v141 = vpop.f32.mrb[0].mxu0
    %v142 = vadd.f32 0.0, %v141
    %v143 = vpop.f32.mrb[0].mxu0
    %144 = vdwg.mxu0
    %145 = vst [vmem:[#allocation7] sm:$0xff] %v137
    %146 = vst [vmem:[#allocation7 + $0x8] sm:$0xff] %v142
    // Predicated region
    $region22: #{tpu_custom_call.1} parent=1 // pred_check
      _
    $region23: #{tpu_custom_call.1} parent=1 // pred_check_branch
      %148 = sbr.rel (0) target = $region25
    $region24: #{tpu_custom_call.1} parent=1 // pred_region
      %s150 = ssub.s32 256, 256
      %151 = vsyncadd [#allocation4], %s150
      %s152 = sshll.u32 [#allocation7], 4
      %s153 = int_to_ptr.vmem [resolvable:$true] %s152
      %158 = dma.vmem_to_hbm [thread:$0]  %s153, 256, %s3, [#allocation4], 128, 128, 8
    $region25: #{tpu_custom_call.1} parent=1 // pred_fallthru
      _
    // Predicated region
    $region26: #{tpu_custom_call.1} parent=1 // pred_check
      _
    $region27: #{tpu_custom_call.1} parent=1 // pred_check_branch
      %160 = sbr.rel (0) target = $region29
    $region28: #{tpu_custom_call.1} parent=1 // pred_region
      %161 = dma.done [#allocation4], 256
    $region29: #{tpu_custom_call.1} parent=1 // pred_fallthru
      _
    %162 = vsyncpa [#allocation3], 1
    %163 = vsyncpa [#allocation6], 1
    %164 = vsyncpa [#allocation4], 1

</llo_original>
